<compile_context>
chip_gen: v7x
topology: tpu7x:2x2x1
jax: 0.10.0
libtpu: 0.0.40
codegen_flags: <defaults>
</compile_context>

<pallas_src>
import functools

import jax
import jax.numpy as jnp
import numpy as np
from jax.experimental import pallas as pl
from jax.experimental.pallas import tpu as pltpu

BN_EPS = 1e-5
DEFAULT_TILE_M = 2048  # 128-aligned; with bf16 h this is ~8.5 MiB double-buffered


def _round_up(x, m):
    return (x + m - 1) // m * m


def _cdiv(a, b):
    return (a + b - 1) // b


@functools.lru_cache(maxsize=None)
def _vmem_limit_bytes():
    """Per-generation VMEM budget: ~3/4 of physical, capped at 96 MiB.

    v7x (64 MiB/TC) -> 48 MiB; v5e/v6e (128 MiB) -> 96 MiB.
    """
    try:
        cap = int(pltpu.get_tpu_info().vmem_capacity_bytes)
    except Exception:  # pragma: no cover - conservative fallback
        cap = 64 * 1024 * 1024
    return min(cap * 3 // 4, 96 * 1024 * 1024)


def _cparams():
    return pltpu.CompilerParams(
        dimension_semantics=("parallel",),      # shard row tiles across v7x's 2 TCs
        vmem_limit_bytes=_vmem_limit_bytes(),
    )


def _row_spec(tile_m, cols):
    return pl.BlockSpec((tile_m, cols), lambda i: (i, 0))


def _const_spec(shape):
    nd = len(shape)
    return pl.BlockSpec(shape, lambda i: (0,) * nd)  # resident across row loop


def _stats_spec(c):
    return pl.BlockSpec((1, 1, c), lambda i: (i, 0, 0))


def _pick_tile(m, tile_m):
    """Row tile (multiple of 16 for bf16 packing), padded M, grid size.

    For M > tile_m the grid is kept even so v7x's second TensorCore gets an
    equal share of tiles (no-op on single-TC v5e/v6e).
    """
    if m <= tile_m:
        tm = _round_up(max(m, 1), 16)
    else:
        n_tiles = _cdiv(m, tile_m)
        if n_tiles % 2:
            n_tiles += 1
        tm = max(_round_up(_cdiv(m, n_tiles), 128), 128)
    m_pad = _round_up(m, tm)
    return tm, m_pad, m_pad // tm


# ----------------------------- Pallas kernels ------------------------------

def _stats_write(h, sum_ref, sq_ref, *, tile_m, m_actual, need_mask):
    """Per-tile channel (sum, sum of squares) from the f32 accumulator.

    Padded rows are masked.  NOTE: single-pass E[x^2]-E[x]^2 in f32; with the
    hidden bias folded out the activations are near zero-mean so cancellation
    is not a practical concern here.
    """
    if need_mask:
        rows = (jax.lax.broadcasted_iota(jnp.int32, (tile_m, 1), 0)
                + pl.program_id(0) * tile_m)
        h = jnp.where(rows < m_actual, h, 0.0)
    sum_ref[...] = jnp.sum(h, axis=0, keepdims=True)[None, :, :]      # (1,1,C)
    sq_ref[...] = jnp.sum(h * h, axis=0, keepdims=True)[None, :, :]   # (1,1,C)


def _linear_stats_kernel(x_ref, w_ref, h_ref, sum_ref, sq_ref, *,
                         tile_m, m_actual, need_mask):
    # bf16 MXU matmul, f32 accumulation.  Hidden-layer bias omitted: it is
    # cancelled exactly by the following train-mode BatchNorm.
    h = jnp.dot(x_ref[...], w_ref[...], preferred_element_type=jnp.float32)
    h_ref[...] = h.astype(h_ref.dtype)          # store bf16 activation
    _stats_write(h, sum_ref, sq_ref, tile_m=tile_m, m_actual=m_actual,
                 need_mask=need_mask)


def _bn_relu_linear_stats_kernel(h_ref, scale_ref, shift_ref, w_ref,
                                 o_ref, sum_ref, sq_ref, *,
                                 tile_m, m_actual, need_mask):
    # Previous layer's BN (precomputed scale/shift, f32) + ReLU, fused with
    # this layer's matmul + partial stats.
    hn = jnp.maximum(
        h_ref[...].astype(jnp.float32) * scale_ref[...] + shift_ref[...], 0.0)
    h2 = jnp.dot(hn.astype(jnp.bfloat16), w_ref[...],
                 preferred_element_type=jnp.float32)
    o_ref[...] = h2.astype(o_ref.dtype)
    _stats_write(h2, sum_ref, sq_ref, tile_m=tile_m, m_actual=m_actual,
                 need_mask=need_mask)


def _bn_relu_final_kernel(h_ref, scale_ref, shift_ref, w_ref, b_ref, o_ref):
    # Last hidden layer's BN + ReLU fused with the final Linear(C -> 1),
    # implemented as VPU multiply + lane reduction (no N=1 MXU matmul).
    hn = jnp.maximum(
        h_ref[...].astype(jnp.float32) * scale_ref[...] + shift_ref[...], 0.0)
    o_ref[...] = jnp.sum(hn * w_ref[...], axis=-1, keepdims=True) + b_ref[...]


def _final_linear_kernel(x_ref, w_ref, b_ref, o_ref):
    # layer_num == 1 case: single Linear(in_num -> 1), f32 VPU path.
    o_ref[...] = jnp.sum(x_ref[...] * w_ref[...], axis=-1,
                         keepdims=True) + b_ref[...]


# ------------------------------- wrappers -----------------------------------

def _linear_stats(x_bf16, w, tile_m, grid, m_actual):
    m_pad, k = x_bf16.shape
    c = w.shape[1]
    kern = functools.partial(_linear_stats_kernel, tile_m=tile_m,
                             m_actual=m_actual, need_mask=(m_pad != m_actual))
    return pl.pallas_call(
        kern,
        grid=(grid,),
        in_specs=[_row_spec(tile_m, k),
                  _const_spec((k, c))],
        out_specs=(_row_spec(tile_m, c),
                   _stats_spec(c),
                   _stats_spec(c)),
        out_shape=(jax.ShapeDtypeStruct((m_pad, c), jnp.bfloat16),
                   jax.ShapeDtypeStruct((grid, 1, c), jnp.float32),
                   jax.ShapeDtypeStruct((grid, 1, c), jnp.float32)),
        compiler_params=_cparams(),
    )(x_bf16, w.astype(jnp.bfloat16))


def _bn_relu_linear_stats(h, scale, shift, w, tile_m, grid, m_actual):
    m_pad, k = h.shape
    c = w.shape[1]
    kern = functools.partial(_bn_relu_linear_stats_kernel, tile_m=tile_m,
                             m_actual=m_actual, need_mask=(m_pad != m_actual))
    return pl.pallas_call(
        kern,
        grid=(grid,),
        in_specs=[_row_spec(tile_m, k),
                  _const_spec((1, k)),
                  _const_spec((1, k)),
                  _const_spec((k, c))],
        out_specs=(_row_spec(tile_m, c),
                   _stats_spec(c),
                   _stats_spec(c)),
        out_shape=(jax.ShapeDtypeStruct((m_pad, c), jnp.bfloat16),
                   jax.ShapeDtypeStruct((grid, 1, c), jnp.float32),
                   jax.ShapeDtypeStruct((grid, 1, c), jnp.float32)),
        compiler_params=_cparams(),
    )(h, scale, shift, w.astype(jnp.bfloat16))


def _bn_relu_final(h, scale, shift, w_row, b, tile_m, grid):
    m_pad, c = h.shape
    return pl.pallas_call(
        _bn_relu_final_kernel,
        grid=(grid,),
        in_specs=[_row_spec(tile_m, c),
                  _const_spec((1, c)),
                  _const_spec((1, c)),
                  _const_spec((1, c)),
                  _const_spec((1, 1))],
        out_specs=_row_spec(tile_m, 1),
        out_shape=jax.ShapeDtypeStruct((m_pad, 1), jnp.float32),
        compiler_params=_cparams(),
    )(h, scale, shift, w_row, b)


def _final_linear(x, w_row, b, tile_m, grid):
    m_pad, k = x.shape
    return pl.pallas_call(
        _final_linear_kernel,
        grid=(grid,),
        in_specs=[_row_spec(tile_m, k),
                  _const_spec((1, k)),
                  _const_spec((1, 1))],
        out_specs=_row_spec(tile_m, 1),
        out_shape=jax.ShapeDtypeStruct((m_pad, 1), jnp.float32),
        compiler_params=_cparams(),
    )(x, w_row, b)


def _bn_affine(sums, sumsqs, gamma, beta, m_actual):
    """Reduce per-tile partials -> per-channel BN scale/shift (tiny JAX op)."""
    s = jnp.sum(sums, axis=(0, 1))                            # (C,)
    ss = jnp.sum(sumsqs, axis=(0, 1))                         # (C,)
    mean = s / m_actual
    var = jnp.maximum(ss / m_actual - mean * mean, 0.0)       # biased, f32
    scale = gamma[0] * jax.lax.rsqrt(var + BN_EPS)
    shift = beta[0] - mean * scale
    return scale[None, :], shift[None, :]


# ---------------------------------- forward ---------------------------------

def out_layer_forward(x, params, tile_m=DEFAULT_TILE_M):
    # x: (B, N, in_num) -> out: (B, N, 1)
    B, N, F = x.shape
    M = B * N
    xf = x.reshape(M, F).astype(jnp.float32)

    tm, m_pad, grid = _pick_tile(M, tile_m)
    if m_pad != M:
        xf = jnp.pad(xf, ((0, m_pad - M), (0, 0)))

    hidden = params["hidden"]
    w_f, b_f = params["final"]["w"], params["final"]["b"]

    if not hidden:  # layer_num == 1: single Linear(in_num -> 1), f32 path
        out = _final_linear(xf, w_f, b_f, tm, grid)
        return out[:M].reshape(B, N, 1)

    # bf16 input: matmul operand is bf16 either way; halves first-layer DMA.
    xb = xf.astype(jnp.bfloat16)
    h, s, ss = _linear_stats(xb, hidden[0]["w"], tm, grid, M)
    scale, shift = _bn_affine(s, ss, hidden[0]["gamma"], hidden[0]["beta"], M)

    for layer in hidden[1:]:
        h, s, ss = _bn_relu_linear_stats(h, scale, shift, layer["w"],
                                         tm, grid, M)
        scale, shift = _bn_affine(s, ss, layer["gamma"], layer["beta"], M)

    out = _bn_relu_final(h, scale, shift, w_f, b_f, tm, grid)
    return out[:M].reshape(B, N, 1)


# ------------------------- parameter construction ---------------------------

def init_out_layer_params(key, in_num, layer_num, inter_num=512):
    """Deterministic init matching the shapes of OutLayer.__init__.

    Hidden weights stored transposed (in, out); final weight stored as a
    (1, fan_in) row so the kernel does a VPU multiply + lane reduction.
    Uniform(-1/sqrt(fan_in), 1/sqrt(fan_in)) like torch defaults.  Hidden
    biases are kept in the param tree (torch parity / reference) but the
    kernels skip them: train-mode BatchNorm cancels them exactly.
    """
    params = {"hidden": [], "final": None}
    for i in range(layer_num):
        if i == layer_num - 1:
            fan_in = in_num if layer_num == 1 else inter_num
            key, kw, kb = jax.random.split(key, 3)
            bound = 1.0 / float(np.sqrt(fan_in))
            params["final"] = {
                "w": jax.random.uniform(kw, (1, fan_in), jnp.float32,
                                        -bound, bound),
                "b": jax.random.uniform(kb, (1, 1), jnp.float32, -bound, bound),
            }
        else:
            fan_in = in_num if i == 0 else inter_num
            key, kw, kb = jax.random.split(key, 3)
            bound = 1.0 / float(np.sqrt(fan_in))
            params["hidden"].append({
                "w": jax.random.uniform(kw, (fan_in, inter_num), jnp.float32,
                                        -bound, bound),
                "b": jax.random.uniform(kb, (1, inter_num), jnp.float32,
                                        -bound, bound),
                "gamma": jnp.ones((1, inter_num), jnp.float32),
                "beta": jnp.zeros((1, inter_num), jnp.float32),
            })
    return params


# ---------------------------- pure-JAX reference -----------------------------

def out_layer_reference(x, params):
    B, N, F = x.shape
    out = x.reshape(B * N, F)
    for layer in params["hidden"]:
        h = out @ layer["w"] + layer["b"]
        mean = jnp.mean(h, axis=0, keepdims=True)
        var = jnp.mean(jnp.square(h - mean), axis=0, keepdims=True)
        h = (h - mean) * jax.lax.rsqrt(var + BN_EPS) * layer["gamma"] \
            + layer["beta"]
        out = jnp.maximum(h, 0.0)
    out = jnp.sum(out * params["final"]["w"], axis=-1, keepdims=True) \
        + params["final"]["b"]
    return out.reshape(B, N, 1)


# TODO(synk): BatchNorm1d running_mean/running_var buffer updates (training-time
# side effects) are not materialized; only the forward normalization is computed.
# If they are ever added, the hidden-layer bias must be reinstated / folded in.


if __name__ == "__main__":
    B, N = 2, 16          # batch, node_num
    in_num = 32           # per-node feature dim
    layer_num = 2
    inter_num = 64

    key = jax.random.PRNGKey(0)
    kx, kp = jax.random.split(key)
    x = jax.random.normal(kx, (B, N, in_num), dtype=jnp.float32)
    params = init_out_layer_params(kp, in_num, layer_num, inter_num)

    out = out_layer_forward(x, params)
    jax.block_until_ready(out)
    assert out.shape == (B, N, 1), out.shape

    ref = out_layer_reference(x, params)
    np.testing.assert_allclose(np.asarray(out), np.asarray(ref),
                               rtol=5e-2, atol=5e-2)
    print("KERNEL_OK")
</pallas_src>

<mosaic_0001>
module attributes {stable_mosaic.version = 11 : i64} {
  func.func @_linear_stats_kernel(%arg0: i32, %arg1: memref<32x32xbf16, #tpu.memory_space<vmem>>, %arg2: memref<32x64xbf16, #tpu.memory_space<vmem>>, %arg3: memref<32x64xbf16, #tpu.memory_space<vmem>>, %arg4: memref<1x1x64xf32, #tpu.memory_space<vmem>>, %arg5: memref<1x1x64xf32, #tpu.memory_space<vmem>>) attributes {dimension_semantics = [#tpu.dimension_semantics<parallel>], iteration_bounds = array<i64: 1>, scalar_prefetch = 0 : i64, scratch_operands = 0 : i64, tpu.core_type = #tpu.core_type<tc>, window_params = [{transform_indices = @transform_0, window_bounds = array<i64: 32, 32>}, {pipeline_mode = #tpu.pipeline_mode<synchronous>, transform_indices = @transform_1, window_bounds = array<i64: 32, 64>}, {transform_indices = @transform_2, window_bounds = array<i64: 32, 64>}, {transform_indices = @transform_3, window_bounds = array<i64: 1, 1, 64>}, {transform_indices = @transform_4, window_bounds = array<i64: 1, 1, 64>}]} {
    %c0 = arith.constant 0 : index
    %c0_0 = arith.constant 0 : index
    %0 = vector.load %arg1[%c0, %c0_0] : memref<32x32xbf16, #tpu.memory_space<vmem>>, vector<32x32xbf16>
    %c0_1 = arith.constant 0 : index
    %c0_2 = arith.constant 0 : index
    %1 = vector.load %arg2[%c0_1, %c0_2] : memref<32x64xbf16, #tpu.memory_space<vmem>>, vector<32x64xbf16>
    %cst = arith.constant dense<0.000000e+00> : vector<32x64xf32>
    %2 = tpu.matmul %0, %1, %cst {dimension_numbers = #tpu.dot_dimension_numbers<[1], [0], [0], [1], [0, 0, 1, 1], [], []>} : vector<32x32xbf16>, vector<32x64xbf16>, vector<32x64xf32> -> vector<32x64xf32>
    %3 = arith.truncf %2 : vector<32x64xf32> to vector<32x64xbf16>
    %c0_3 = arith.constant 0 : index
    %c0_4 = arith.constant 0 : index
    %4 = vector.load %arg3[%c0_3, %c0_4] : memref<32x64xbf16, #tpu.memory_space<vmem>>, vector<32x64xbf16>
    tpu.vector_store %arg3[%c0_3, %c0_4], %3 {strides = array<i32>} : memref<32x64xbf16, #tpu.memory_space<vmem>>, vector<32x64xbf16>,
    %cst_5 = arith.constant dense<0.000000e+00> : vector<64xf32>
    %5 = vector.multi_reduction <add>, %2, %cst_5 [0] : vector<32x64xf32> to vector<64xf32>
    %6 = vector.shape_cast %5 : vector<64xf32> to vector<1x64xf32>
    %7 = vector.shape_cast %6 : vector<1x64xf32> to vector<1x1x64xf32>
    %c0_6 = arith.constant 0 : index
    %c0_7 = arith.constant 0 : index
    %c0_8 = arith.constant 0 : index
    %8 = vector.load %arg4[%c0_6, %c0_7, %c0_8] : memref<1x1x64xf32, #tpu.memory_space<vmem>>, vector<1x1x64xf32>
    tpu.vector_store %arg4[%c0_6, %c0_7, %c0_8], %7 {strides = array<i32>} : memref<1x1x64xf32, #tpu.memory_space<vmem>>, vector<1x1x64xf32>,
    %9 = arith.mulf %2, %2 : vector<32x64xf32>
    %cst_9 = arith.constant dense<0.000000e+00> : vector<64xf32>
    %10 = vector.multi_reduction <add>, %9, %cst_9 [0] : vector<32x64xf32> to vector<64xf32>
    %11 = vector.shape_cast %10 : vector<64xf32> to vector<1x64xf32>
    %12 = vector.shape_cast %11 : vector<1x64xf32> to vector<1x1x64xf32>
    %c0_10 = arith.constant 0 : index
    %c0_11 = arith.constant 0 : index
    %c0_12 = arith.constant 0 : index
    %13 = vector.load %arg5[%c0_10, %c0_11, %c0_12] : memref<1x1x64xf32, #tpu.memory_space<vmem>>, vector<1x1x64xf32>
    tpu.vector_store %arg5[%c0_10, %c0_11, %c0_12], %12 {strides = array<i32>} : memref<1x1x64xf32, #tpu.memory_space<vmem>>, vector<1x1x64xf32>,
    return
  }
  func.func @transform_0(%arg0: i32) -> (i32, i32) {
    %c0_i32 = arith.constant 0 : i32
    %c0_i32_0 = arith.constant 0 : i32
    return %arg0, %c0_i32 : i32, i32
  }
  func.func @transform_1(%arg0: i32) -> (i32, i32) {
    %c0_i32 = arith.constant 0 : i32
    %c0_i32_0 = arith.constant 0 : i32
    %c0_i32_1 = arith.constant 0 : i32
    return %c0_i32, %c0_i32_0 : i32, i32
  }
  func.func @transform_2(%arg0: i32) -> (i32, i32) {
    %c0_i32 = arith.constant 0 : i32
    %c0_i32_0 = arith.constant 0 : i32
    return %arg0, %c0_i32 : i32, i32
  }
  func.func @transform_3(%arg0: i32) -> (i32, i32, i32) {
    %c0_i32 = arith.constant 0 : i32
    %c0_i32_0 = arith.constant 0 : i32
    %c0_i32_1 = arith.constant 0 : i32
    return %arg0, %c0_i32, %c0_i32_0 : i32, i32, i32
  }
  func.func @transform_4(%arg0: i32) -> (i32, i32, i32) {
    %c0_i32 = arith.constant 0 : i32
    %c0_i32_0 = arith.constant 0 : i32
    %c0_i32_1 = arith.constant 0 : i32
    return %arg0, %c0_i32, %c0_i32_0 : i32, i32, i32
  }
}

</mosaic_0001>

<llo_original>
// kernel: tpu_custom_call.1
$region0: #{tpu_custom_call.1}
  #allocation0 [shape = 'u32[]', space=smem, size = 0x4, offset = 0x4, fixed_abs, tag = 'smem constant byte address 0x4 - core index']
  #allocation1 [shape = 'u32[144,128]{1,0:T(1,128)}', space=vmem, size = 0x12000, scoped, tag = 'internal scratch']
  %s0 = inlined_call_operand.hbm [shape: bf16[32,32], index: 0, kind: input, shape index: {}]
  %s1 = inlined_call_operand.hbm [shape: bf16[32,64], index: 1, kind: input, shape index: {}]
  %s2 = inlined_call_operand.hbm [shape: bf16[32,64], index: 2, kind: output, shape index: {0}]
  %s3 = inlined_call_operand.hbm [shape: f32[1,1,64], index: 3, kind: output, shape index: {1}]
  %s4 = inlined_call_operand.hbm [shape: f32[1,1,64], index: 4, kind: output, shape index: {2}]
  %5 = xla_tuple %s2, %s3, %s4
  %s6 = sld [smem:[#allocation0]]
  $region42: #{tpu_custom_call.1} parent=0
    _
  %s8 = ssub.s32 1, %s6
  %s9 = scalar_select 0, %s8, %s6
  $region1: #{tpu_custom_call.1} parent=0
    #allocation2 [shape = 'u8[8192]{0}', space=vmem, size = 0x2000, scoped, tag = 'input window, operand 0, single buffered']
    #allocation3 [shape = 's32[1]{0}', space=sflag, size = 0x4, scoped, tag = 'scoped memory for tpu_custom_call.1']
    #allocation4 [shape = 's32[1]{0}', space=sflag, size = 0x4, scoped, tag = 'scoped memory for tpu_custom_call.1']
    #allocation5 [shape = 'u8[8192]{0}', space=vmem, size = 0x2000, scoped, tag = 'input window, operand 1, single buffered']
    #allocation6 [shape = 's32[1]{0}', space=sflag, size = 0x4, scoped, tag = 'scoped memory for tpu_custom_call.1']
    #allocation7 [shape = 'u8[8192]{0}', space=vmem, size = 0x2000, scoped, tag = 'output window, operand 0, single buffered']
    #allocation8 [shape = 'u8[512]{0}', space=vmem, size = 0x400, scoped, tag = 'output window, operand 1, single buffered']
    #allocation9 [shape = 's32[1]{0}', space=sflag, size = 0x4, scoped, tag = 'scoped memory for tpu_custom_call.1']
    #allocation10 [shape = 'u8[512]{0}', space=vmem, size = 0x400, scoped, tag = 'output window, operand 2, single buffered']
    %10 = vsyncpa [#allocation3], 0
    %11 = vsyncpa [#allocation6], 0
    %12 = vsyncpa [#allocation4], 0
    %13 = vsyncpa [#allocation9], 0
    // Predicated region
    $region2: #{tpu_custom_call.1} parent=1 // pred_check
      _
    $region3: #{tpu_custom_call.1} parent=1 // pred_check_branch
      %15 = sbr.rel (0) target = $region5
    $region4: #{tpu_custom_call.1} parent=1 // pred_region
      %s17 = ssub.s32 256, 256
      %18 = vsyncadd [#allocation3], %s17
      %s19 = sshll.u32 [#allocation2], 4
      %s20 = int_to_ptr.vmem [resolvable:$true] %s19
      %25 = dma.hbm_to_vmem [thread:$0]  %s0, 256, %s20, [#allocation3], 64, 64, 4
    $region5: #{tpu_custom_call.1} parent=1 // pred_fallthru
      _
    // Predicated region
    $region6: #{tpu_custom_call.1} parent=1 // pred_check
      _
    $region7: #{tpu_custom_call.1} parent=1 // pred_check_branch
      %27 = sbr.rel (0) target = $region9
    $region8: #{tpu_custom_call.1} parent=1 // pred_region
      %s29 = ssub.s32 256, 256
      %30 = vsyncadd [#allocation6], %s29
      %s31 = sshll.u32 [#allocation5], 4
      %s32 = int_to_ptr.vmem [resolvable:$true] %s31
      %37 = dma.hbm_to_vmem [thread:$0]  %s1, 256, %s32, [#allocation6], 64, 64, 4
    $region9: #{tpu_custom_call.1} parent=1 // pred_fallthru
      _
    // Predicated region
    $region10: #{tpu_custom_call.1} parent=1 // pred_check
      _
    $region11: #{tpu_custom_call.1} parent=1 // pred_check_branch
      %39 = sbr.rel (0) target = $region13
    $region12: #{tpu_custom_call.1} parent=1 // pred_region
      %40 = dma.done [#allocation3], 256
    $region13: #{tpu_custom_call.1} parent=1 // pred_fallthru
      _
    // Predicated region
    $region14: #{tpu_custom_call.1} parent=1 // pred_check
      _
    $region15: #{tpu_custom_call.1} parent=1 // pred_check_branch
      %42 = sbr.rel (0) target = $region17
    $region16: #{tpu_custom_call.1} parent=1 // pred_region
      %43 = dma.done [#allocation6], 256
    $region17: #{tpu_custom_call.1} parent=1 // pred_fallthru
      _
    %v45 = vld [vmem:[#allocation2] sm:$0xf]
    %v46 = vld [vmem:[#allocation2 + $0x4] sm:$0xf]
    %v47 = vld [vmem:[#allocation2 + $0x8] sm:$0xf]
    %v48 = vld [vmem:[#allocation2 + $0xc] sm:$0xf]
    %v49 = vld [vmem:[#allocation5] sm:$0xf]
    %v50 = vld [vmem:[#allocation5 + $0x4] sm:$0xf]
    %v51 = vld [vmem:[#allocation5 + $0x8] sm:$0xf]
    %v52 = vld [vmem:[#allocation5 + $0xc] sm:$0xf]
    %v57 = vunpack.c.l.b16 %v45
    %v58 = vunpack.c.l.b16 %v46
    %v59 = vunpack.c.l.b16 %v47
    %v60 = vunpack.c.l.b16 %v48
    %v61 = vpack.c.b16 %v58, %v57
    %v62 = vpack.c.b16 %v60, %v59
    %v67 = vunpack.c.l.b16 %v49
    %v68 = vunpack.c.l.b16 %v50
    %v69 = vunpack.c.l.b16 %v51
    %v70 = vunpack.c.l.b16 %v52
    %v71 = vpack.c.b16 %v68, %v67
    %v72 = vpack.c.b16 %v70, %v69
    %vm75 = vcmask 261120
    %v77 = vsel %vm75, %v61, 0
    %v80 = vsel %vm75, %v62, 0
    %82 = vmatprep.subr.bf16.mxu0 0
    %83 = vmatpush1.bf16.msra.mxu0 %v71
    %84 = vmatprep.subr.bf16.mxu0 0
    %85 = vmatpush1.bf16.msra.mxu0 %v72
    %86 = vmatprep.subr.bf16.mxu0 0
    %87 = vmatpush1.bf16.msra.mxu0 0
    %88 = vmatprep.subr.bf16.mxu0 0
    %89 = vmatpush1.bf16.msra.mxu0 0
    %90 = vmatprep.subr.bf16.mxu0 0
    %91 = vmatpush1.bf16.msra.mxu0 0
    %92 = vmatprep.subr.bf16.mxu0 0
    %93 = vmatpush1.bf16.msra.mxu0 0
    %94 = vmatprep.subr.bf16.mxu0 0
    %95 = vmatpush1.bf16.msra.mxu0 0
    %96 = vmatprep.subr.bf16.mxu0 0
    %97 = vmatpush1.bf16.msra.mxu0 0
    %98 = vmatprep.subr.bf16.mxu0 0
    %99 = vmatpush1.bf16.msra.mxu0 0
    %100 = vmatprep.subr.bf16.mxu0 0
    %101 = vmatpush1.bf16.msra.mxu0 0
    %102 = vmatprep.subr.bf16.mxu0 0
    %103 = vmatpush1.bf16.msra.mxu0 0
    %104 = vmatprep.subr.bf16.mxu0 0
    %105 = vmatpush1.bf16.msra.mxu0 0
    %106 = vmatprep.subr.bf16.mxu0 0
    %107 = vmatpush1.bf16.msra.mxu0 0
    %108 = vmatprep.subr.bf16.mxu0 0
    %109 = vmatpush1.bf16.msra.mxu0 0
    %110 = vmatprep.subr.bf16.mxu0 0
    %111 = vmatpush1.bf16.msra.mxu0 0
    %112 = vmatprep.subr.bf16.mxu0 0
    %113 = vmatpush1.bf16.msra.mxu0 0
    %114 = vmatprep.mubr.bf16.mxu0 0
    %115 = vmatmul.mubr.bf16.gmra.mrb[0].mxu0 %v77
    %v116 = vpop.f32.mrb[0].mxu0
    %v117 = vadd.f32 0.0, %v116
    %v118 = vpop.f32.mrb[0].mxu0
    %v119 = vpop.f32.mrb[0].mxu0
    %v120 = vadd.f32 0.0, %v119
    %v121 = vpop.f32.mrb[0].mxu0
    %122 = vmatprep.mubr.bf16.mxu0 0
    %123 = vmatmul.mubr.bf16.gmra.mrb[0].mxu0 %v80
    %v124 = vpop.f32.mrb[0].mxu0
    %v125 = vadd.f32 0.0, %v124
    %v126 = vpop.f32.mrb[0].mxu0
    %v127 = vpop.f32.mrb[0].mxu0
    %v128 = vadd.f32 0.0, %v127
    %v129 = vpop.f32.mrb[0].mxu0
    %130 = vdwg.mxu0
    %v131 = vpack.c.bf16 %v120, %v117
    %v132 = vpack.c.bf16 %v128, %v125
    %v135 = vunpack.c.l.b16 %v131
    %v136 = vunpack.c.h.b16 %v131
    %v137 = vunpack.c.l.b16 %v132
    %v138 = vunpack.c.h.b16 %v132
    %v139 = vpack.c.b16 %v135, %v135
    %v140 = vpack.c.b16 %v136, %v136
    %v141 = vpack.c.b16 %v137, %v137
    %v142 = vpack.c.b16 %v138, %v138
    %vm147 = vcmask 519168
    %148 = vst.msk [vmem:[#allocation7] sm:$0xf] %vm147, %v139
    %149 = vst.msk [vmem:[#allocation7 + $0x4] sm:$0xf] %vm147, %v140
    %150 = vst.msk [vmem:[#allocation7 + $0x8] sm:$0xf] %vm147, %v141
    %151 = vst.msk [vmem:[#allocation7 + $0xc] sm:$0xf] %vm147, %v142
    %vm152 = vcmask 523264
    %v153 = vsel %vm152, %v117, 0.0
    %v154 = vsel %vm152, %v120, 0.0
    %v155 = vadd.f32 %v153, %v154
    %v156 = vsel %vm152, %v125, 0.0
    %v157 = vadd.f32 %v155, %v156
    %v158 = vsel %vm152, %v128, 0.0
    %v159 = vadd.f32 %v157, %v158
    %v160 = vrot.slane %v159, 4
    %v161 = vadd.f32 %v159, %v160
    %v162 = vrot.slane %v161, 2
    %v163 = vadd.f32 %v161, %v162
    %v164 = vrot.slane %v163, 1
    %v165 = vadd.f32 %v163, %v164
    %vm166 = vcmask 516096
    %167 = vst.msk [vmem:[#allocation8] sm:$0x1] %vm166, %v165
    %v168 = vmul.f32 %v117, %v117
    %v169 = vmul.f32 %v120, %v120
    %v170 = vmul.f32 %v125, %v125
    %v171 = vmul.f32 %v128, %v128
    %v172 = vsel %vm152, %v168, 0.0
    %v173 = vsel %vm152, %v169, 0.0
    %v174 = vadd.f32 %v172, %v173
    %v175 = vsel %vm152, %v170, 0.0
    %v176 = vadd.f32 %v174, %v175
    %v177 = vsel %vm152, %v171, 0.0
    %v178 = vadd.f32 %v176, %v177
    %v179 = vrot.slane %v178, 4
    %v180 = vadd.f32 %v178, %v179
    %v181 = vrot.slane %v180, 2
    %v182 = vadd.f32 %v180, %v181
    %v183 = vrot.slane %v182, 1
    %v184 = vadd.f32 %v182, %v183
    %185 = vst.msk [vmem:[#allocation10] sm:$0x1] %vm166, %v184
    // Predicated region
    $region18: #{tpu_custom_call.1} parent=1 // pred_check
      _
    $region19: #{tpu_custom_call.1} parent=1 // pred_check_branch
      %187 = sbr.rel (0) target = $region21
    $region20: #{tpu_custom_call.1} parent=1 // pred_region
      %s189 = ssub.s32 256, 256
      %190 = vsyncadd [#allocation4], %s189
      %s191 = sshll.u32 [#allocation7], 4
      %s192 = int_to_ptr.vmem [resolvable:$true] %s191
      %197 = dma.vmem_to_hbm [thread:$0]  %s192, 256, %s2, [#allocation4], 64, 64, 4
    $region21: #{tpu_custom_call.1} parent=1 // pred_fallthru
      _
    // Predicated region
    $region22: #{tpu_custom_call.1} parent=1 // pred_check
      _
    $region23: #{tpu_custom_call.1} parent=1 // pred_check_branch
      %199 = sbr.rel (0) target = $region25
    $region24: #{tpu_custom_call.1} parent=1 // pred_region
      %s201 = ssub.s32 16, 16
      %202 = vsyncadd [#allocation9], %s201
      %s204 = sshll.u32 [#allocation8], 4
      %s205 = int_to_ptr.vmem [resolvable:$true] %s204
      %207 = dma.vmem_to_hbm [thread:$0]  %s205, 16, %s3, [#allocation9]
    $region25: #{tpu_custom_call.1} parent=1 // pred_fallthru
      _
    // Predicated region
    $region26: #{tpu_custom_call.1} parent=1 // pred_check
      _
    $region27: #{tpu_custom_call.1} parent=1 // pred_check_branch
      %209 = sbr.rel (0) target = $region29
    $region28: #{tpu_custom_call.1} parent=1 // pred_region
      %s211 = ssub.s32 16, 16
      %212 = vsyncadd [#allocation9], %s211
      %s214 = sshll.u32 [#allocation10], 4
      %s215 = int_to_ptr.vmem [resolvable:$true] %s214
      %217 = dma.vmem_to_hbm [thread:$0]  %s215, 16, %s4, [#allocation9]
    $region29: #{tpu_custom_call.1} parent=1 // pred_fallthru
      _
    // Predicated region
    $region30: #{tpu_custom_call.1} parent=1 // pred_check
      _
    $region31: #{tpu_custom_call.1} parent=1 // pred_check_branch
      %219 = sbr.rel (0) target = $region33
    $region32: #{tpu_custom_call.1} parent=1 // pred_region
      %220 = dma.done [#allocation4], 256
    $region33: #{tpu_custom_call.1} parent=1 // pred_fallthru
      _
    // Predicated region
    $region34: #{tpu_custom_call.1} parent=1 // pred_check
      _
    $region35: #{tpu_custom_call.1} parent=1 // pred_check_branch
      %222 = sbr.rel (0) target = $region37
    $region36: #{tpu_custom_call.1} parent=1 // pred_region
      %223 = dma.done [#allocation9], 16
    $region37: #{tpu_custom_call.1} parent=1 // pred_fallthru
      _
    // Predicated region
    $region38: #{tpu_custom_call.1} parent=1 // pred_check
      _
    $region39: #{tpu_custom_call.1} parent=1 // pred_check_branch
      %225 = sbr.rel (0) target = $region41
    $region40: #{tpu_custom_call.1} parent=1 // pred_region
      %226 = dma.done [#allocation9], 16
    $region41: #{tpu_custom_call.1} parent=1 // pred_fallthru
      _
    %227 = vsyncpa [#allocation3], 1
    %228 = vsyncpa [#allocation6], 1
    %229 = vsyncpa [#allocation4], 1
    %230 = vsyncpa [#allocation9], 1

</llo_original>
